<compile_context>
chip_gen: v6e
topology: v6e:2x2x1
jax: 0.10.0
libtpu: 0.0.40
codegen_flags: <defaults>
</compile_context>

<pallas_src>
import functools

import jax
import jax.numpy as jnp
from jax import lax
from jax.experimental import pallas as pl
from jax.experimental.pallas import tpu as pltpu


def _conv1x1_swish_shuffle_kernel(x_ref, w_ref, b_ref, o_ref):
    """Fused 1x1-conv + bias + swish + PixelShuffle(r) on one (batch, row-strip) tile.

    x_ref: (1, TH, W, Cin)            NHWC input tile
    w_ref: (Cin, Cmid)                1x1-conv weight, columns in phase-major order (i*r+j)*C_out + c
    b_ref: (1, Cmid)                  bias, same phase-major column order
    o_ref: (1, TH, r, W, r*C_out)     output tile; (N,H,r,W,r*C_out) reshapes freely to NHWC (N,rH,rW,C_out)
    """
    r = o_ref.shape[2]
    rC = o_ref.shape[4]                       # r * C_out
    # Single MXU matmul over the whole row-strip, f32 accumulation.
    y = lax.dot_general(
        x_ref[0], w_ref[...],
        dimension_numbers=(((2,), (0,)), ((), ())),
        preferred_element_type=jnp.float32,
    )                                         # (TH, W, Cmid)
    y = y + b_ref[0]
    y = y * jax.nn.sigmoid(y)                 # MemoryEfficientSwish == x * sigmoid(x)
    y = y.astype(o_ref.dtype)
    # Pixel shuffle: row-phase i goes to output plane i.  The column interleave (w, j) and the
    # channel split are already encoded by the phase-major channel order + the output layout,
    # so each store is a plain contiguous lane-slice (unrolled static loop over r phases).
    for i in range(r):
        o_ref[0, :, i, :, :] = y[:, :, i * rC:(i + 1) * rC]


def _pick_row_tile(H, W, Cin, Cmid, in_itemsize, out_itemsize,
                   budget_bytes=6 * 1024 * 1024):
    """Largest divisor of H whose working set fits a conservative per-tile VMEM budget.

    Accounts for: double-buffered input strip, double-buffered output strip, the resident
    (non-revisited) weight, and the f32 conv/swish intermediate held in vregs/VMEM.
    """
    weight_bytes = Cin * Cmid * in_itemsize
    best = 1
    for th in range(1, H + 1):
        if H % th:
            continue
        per_tile = (2 * th * W * Cin * in_itemsize        # input strip, double-buffered
                    + 2 * th * W * Cmid * out_itemsize    # output strip, double-buffered
                    + th * W * Cmid * 4)                   # f32 accumulator / swish temp
        if weight_bytes + per_tile <= budget_bytes:
            best = th
    return best


def upconv_block_subpixel(params, x_nchw, *, up_scale):
    """Forward pass of UpConvBlock_subpixel. x_nchw: (N, Cin, H, W) -> (N, Cmid/r^2, rH, rW)."""
    r = int(up_scale)
    w = params["w"][:, :, 0, 0]               # (Cmid, Cin)  PyTorch Conv2d(k=1) weight
    b = params["b"]                            # (Cmid,)
    Cmid, Cin = w.shape
    assert Cmid % (r * r) == 0, "out_channels must be divisible by up_scale**2"
    C_out = Cmid // (r * r)

    # Phase-major column reordering:
    #   new column (i*r + j)*C_out + c  <-  old output channel c*r^2 + i*r + j.
    w_pm = jnp.transpose(w.reshape(C_out, r * r, Cin), (1, 0, 2)).reshape(r * r * C_out, Cin)
    w_pm = jnp.transpose(w_pm)                 # (Cin, Cmid), columns phase-major
    b_pm = jnp.transpose(b.reshape(C_out, r * r)).reshape(r * r * C_out)

    x = jnp.transpose(x_nchw, (0, 2, 3, 1))    # single boundary transpose to NHWC
    N, H, W, _ = x.shape
    th = _pick_row_tile(H, W, Cin, Cmid,
                        jnp.dtype(x.dtype).itemsize, jnp.dtype(x.dtype).itemsize)

    out5 = pl.pallas_call(
        _conv1x1_swish_shuffle_kernel,
        out_shape=jax.ShapeDtypeStruct((N, H, r, W, r * C_out), x.dtype),
        grid=(N, H // th),
        in_specs=[
            pl.BlockSpec((1, th, W, Cin), lambda n, t: (n, t, 0, 0)),
            pl.BlockSpec((Cin, Cmid), lambda n, t: (0, 0)),     # resident, fetched once
            pl.BlockSpec((1, Cmid), lambda n, t: (0, 0)),
        ],
        out_specs=pl.BlockSpec((1, th, r, W, r * C_out), lambda n, t: (n, t, 0, 0, 0)),
        compiler_params=pltpu.CompilerParams(
            dimension_semantics=("parallel", "parallel"),
            vmem_limit_bytes=32 * 1024 * 1024,
        ),
    )(x, w_pm, b_pm[None, :])

    out_nhwc = out5.reshape(N, H * r, W * r, C_out)       # free (contiguous) reshape
    return jnp.transpose(out_nhwc, (0, 3, 1, 2))           # back to PyTorch NCHW


def upconv_block_subpixel_ref(params, x_nchw, *, up_scale):
    """Pure-JAX reference: Conv2d(k=1) -> swish -> PixelShuffle(r)."""
    r = int(up_scale)
    w = params["w"][:, :, 0, 0]
    b = params["b"]
    y = jnp.einsum("nchw,oc->nohw", x_nchw, w) + b[None, :, None, None]
    y = y * jax.nn.sigmoid(y)
    N, Cmid, H, W = y.shape
    C_out = Cmid // (r * r)
    y = y.reshape(N, C_out, r, r, H, W)
    y = jnp.transpose(y, (0, 1, 4, 2, 5, 3))
    return y.reshape(N, C_out, H * r, W * r)


if __name__ == "__main__":
    key = jax.random.PRNGKey(0)
    kx, kw, kb = jax.random.split(key, 3)

    N, Cin, H, W = 2, 32, 16, 16
    up_scale = 2
    out_channels = 16                          # Cmid; final channels = 16 / 2^2 = 4

    x = jax.random.normal(kx, (N, Cin, H, W), jnp.float32)
    params = dict(
        w=jax.random.normal(kw, (out_channels, Cin, 1, 1), jnp.float32) * (1.0 / (Cin ** 0.5)),
        b=jax.random.normal(kb, (out_channels,), jnp.float32) * 0.1,
    )

    fwd = jax.jit(functools.partial(upconv_block_subpixel, up_scale=up_scale))
    out = jax.block_until_ready(fwd(params, x))

    ref = jax.block_until_ready(
        jax.jit(functools.partial(upconv_block_subpixel_ref, up_scale=up_scale))(params, x))

    assert out.shape == (N, out_channels // (up_scale ** 2), H * up_scale, W * up_scale), out.shape
    assert bool(jnp.all(jnp.isfinite(out)))
    max_err = float(jnp.max(jnp.abs(out - ref)))
    assert max_err < 5e-2, f"max abs error vs reference: {max_err}"
    print("KERNEL_OK")
</pallas_src>

<mosaic_0001>
module attributes {stable_mosaic.version = 11 : i64} {
  func.func @_conv1x1_swish_shuffle_kernel(%arg0: i32, %arg1: i32, %arg2: memref<1x16x16x32xf32, #tpu.memory_space<vmem>>, %arg3: memref<32x16xf32, #tpu.memory_space<vmem>>, %arg4: memref<1x16xf32, #tpu.memory_space<vmem>>, %arg5: memref<1x16x2x16x8xf32, #tpu.memory_space<vmem>>) attributes {dimension_semantics = [#tpu.dimension_semantics<parallel>, #tpu.dimension_semantics<parallel>], iteration_bounds = array<i64: 2, 1>, scalar_prefetch = 0 : i64, scratch_operands = 0 : i64, tpu.core_type = #tpu.core_type<tc>, window_params = [{transform_indices = @transform_0, window_bounds = array<i64: 1, 16, 16, 32>}, {pipeline_mode = #tpu.pipeline_mode<synchronous>, transform_indices = @transform_1, window_bounds = array<i64: 32, 16>}, {pipeline_mode = #tpu.pipeline_mode<synchronous>, transform_indices = @transform_2, window_bounds = array<i64: 1, 16>}, {transform_indices = @transform_3, window_bounds = array<i64: 1, 16, 2, 16, 8>}]} {
    %c0 = arith.constant 0 : index
    %c0_0 = arith.constant 0 : index
    %c0_1 = arith.constant 0 : index
    %c0_2 = arith.constant 0 : index
    %0 = vector.load %arg2[%c0, %c0_0, %c0_1, %c0_2] : memref<1x16x16x32xf32, #tpu.memory_space<vmem>>, vector<1x16x16x32xf32>
    %1 = vector.shape_cast %0 : vector<1x16x16x32xf32> to vector<16x16x32xf32>
    %c0_3 = arith.constant 0 : index
    %c0_4 = arith.constant 0 : index
    %2 = vector.load %arg3[%c0_3, %c0_4] : memref<32x16xf32, #tpu.memory_space<vmem>>, vector<32x16xf32>
    %cst = arith.constant dense<0.000000e+00> : vector<16x16x16xf32>
    %3 = tpu.matmul %1, %2, %cst {dimension_numbers = #tpu.dot_dimension_numbers<[2], [0], [0, 1], [1], [0, 0, 0, 1, 1, 1], [], []>} : vector<16x16x32xf32>, vector<32x16xf32>, vector<16x16x16xf32> -> vector<16x16x16xf32>
    %c0_5 = arith.constant 0 : index
    %c0_6 = arith.constant 0 : index
    %4 = vector.load %arg4[%c0_5, %c0_6] : memref<1x16xf32, #tpu.memory_space<vmem>>, vector<1x16xf32>
    %5 = vector.shape_cast %4 : vector<1x16xf32> to vector<16xf32>
    %6 = vector.shape_cast %5 : vector<16xf32> to vector<1x1x16xf32>
    %7 = vector.broadcast %6 : vector<1x1x16xf32> to vector<16x16x16xf32>
    %8 = arith.addf %3, %7 : vector<16x16x16xf32>
    %9 = arith.negf %8 : vector<16x16x16xf32>
    %10 = math.exp %9 : vector<16x16x16xf32>
    %cst_7 = arith.constant 1.000000e+00 : f32
    %11 = vector.broadcast %cst_7 : f32 to vector<16x16x16xf32>
    %12 = arith.addf %11, %10 : vector<16x16x16xf32>
    %13 = arith.divf %11, %12 : vector<16x16x16xf32>
    %14 = arith.mulf %8, %13 : vector<16x16x16xf32>
    %15 = vector.extract_strided_slice %14 {offsets = [0, 0, 0], sizes = [16, 16, 8], strides = [1, 1, 1]} : vector<16x16x16xf32> to vector<16x16x8xf32>
    %c0_8 = arith.constant 0 : index
    %c0_9 = arith.constant 0 : index
    %c0_10 = arith.constant 0 : index
    %c0_11 = arith.constant 0 : index
    %c0_12 = arith.constant 0 : index
    %16 = vector.load %arg5[%c0_8, %c0_9, %c0_10, %c0_11, %c0_12] : memref<1x16x2x16x8xf32, #tpu.memory_space<vmem>>, vector<1x16x1x16x8xf32>
    %17 = vector.shape_cast %16 : vector<1x16x1x16x8xf32> to vector<16x16x8xf32>
    %18 = vector.shape_cast %15 : vector<16x16x8xf32> to vector<1x16x1x16x8xf32>
    tpu.vector_store %arg5[%c0_8, %c0_9, %c0_10, %c0_11, %c0_12], %18 {strides = array<i32>} : memref<1x16x2x16x8xf32, #tpu.memory_space<vmem>>, vector<1x16x1x16x8xf32>,
    %19 = vector.extract_strided_slice %14 {offsets = [0, 0, 8], sizes = [16, 16, 8], strides = [1, 1, 1]} : vector<16x16x16xf32> to vector<16x16x8xf32>
    %c0_13 = arith.constant 0 : index
    %c0_14 = arith.constant 0 : index
    %c1 = arith.constant 1 : index
    %c0_15 = arith.constant 0 : index
    %c0_16 = arith.constant 0 : index
    %20 = vector.load %arg5[%c0_13, %c0_14, %c1, %c0_15, %c0_16] : memref<1x16x2x16x8xf32, #tpu.memory_space<vmem>>, vector<1x16x1x16x8xf32>
    %21 = vector.shape_cast %20 : vector<1x16x1x16x8xf32> to vector<16x16x8xf32>
    %22 = vector.shape_cast %19 : vector<16x16x8xf32> to vector<1x16x1x16x8xf32>
    tpu.vector_store %arg5[%c0_13, %c0_14, %c1, %c0_15, %c0_16], %22 {strides = array<i32>} : memref<1x16x2x16x8xf32, #tpu.memory_space<vmem>>, vector<1x16x1x16x8xf32>,
    return
  }
  func.func @transform_0(%arg0: i32, %arg1: i32) -> (i32, i32, i32, i32) {
    %c0_i32 = arith.constant 0 : i32
    %c0_i32_0 = arith.constant 0 : i32
    %c0_i32_1 = arith.constant 0 : i32
    return %arg0, %arg1, %c0_i32, %c0_i32_0 : i32, i32, i32, i32
  }
  func.func @transform_1(%arg0: i32, %arg1: i32) -> (i32, i32) {
    %c0_i32 = arith.constant 0 : i32
    %c0_i32_0 = arith.constant 0 : i32
    %c0_i32_1 = arith.constant 0 : i32
    return %c0_i32, %c0_i32_0 : i32, i32
  }
  func.func @transform_2(%arg0: i32, %arg1: i32) -> (i32, i32) {
    %c0_i32 = arith.constant 0 : i32
    %c0_i32_0 = arith.constant 0 : i32
    %c0_i32_1 = arith.constant 0 : i32
    return %c0_i32, %c0_i32_0 : i32, i32
  }
  func.func @transform_3(%arg0: i32, %arg1: i32) -> (i32, i32, i32, i32, i32) {
    %c0_i32 = arith.constant 0 : i32
    %c0_i32_0 = arith.constant 0 : i32
    %c0_i32_1 = arith.constant 0 : i32
    %c0_i32_2 = arith.constant 0 : i32
    return %arg0, %arg1, %c0_i32, %c0_i32_0, %c0_i32_1 : i32, i32, i32, i32, i32
  }
}

</mosaic_0001>

<llo_original>
// kernel: upconv_block_subpixel.1
$region0: #{upconv_block_subpixel.1}
  #allocation0 [shape = 'u32[]', space=smem, size = 0x4, offset = 0x4, fixed_abs, tag = 'smem constant byte address 0x4 - core index']
  #allocation1 [shape = 'u32[144,128]{1,0:T(1,128)}', space=vmem, size = 0x12000, scoped, tag = 'internal scratch']
  %s0 = inlined_call_operand.hbm [shape: f32[2,16,16,32], index: 0, kind: input, shape index: {}]
  %s1 = inlined_call_operand.vmem [shape: f32[32,16], index: 1, kind: input, shape index: {}]
  %s2 = inlined_call_operand.vmem [shape: f32[1,16], index: 2, kind: input, shape index: {}]
  %s3 = inlined_call_operand.vmem [shape: f32[2,16,2,16,8], index: 3, kind: output, shape index: {}]
  %s4 = sld [smem:[#allocation0]]
  $region49: #{upconv_block_subpixel.1} parent=0
    _
  %s6 = ssub.s32 1, %s4
  %s7 = scalar_select 0, %s6, %s4
  $region1: #{upconv_block_subpixel.1} parent=0
    #allocation2 [shape = 'u8[262144]{0}', space=vmem, size = 0x40000, scoped, tag = 'input window, operand 0']
    #allocation3 [shape = 's32[2]{0}', space=sflag, size = 0x8, scoped, tag = 'scoped memory for upconv_block_subpixel.1']
    %8 = vsyncpa [#allocation3], 0
    %s9 = scalar_lea.sflag [#allocation3], 1
    %10 = vsyncpa %s9, 0
    loop: start=0, step=1, limit=4
    $region2: #{upconv_block_subpixel.1} parent=1 // loop_pre_header
      _
    $region3: #{upconv_block_subpixel.1} parent=1 // loop_header
      %s12 = sphi 0, %s16
      %p13 = scmp.ge.s32.totalorder %s12, 4
      %s19 = sphi 0, %s31
      %s20 = sphi 0, %s27
      %s21 = sphi 0, %s19
      %s22 = sphi 0, %s20
      %s23 = sphi 0, %s21
      %s24 = sphi 0, %s22
      %s36 = sphi 0, %s38
      %s39 = sphi 0, %s36
      %s40 = sphi 0, %s39
      %s56 = sphi 0, %s40
      %s60 = sphi 0, %s60
      %s62 = sphi 0, %s60
      %s63 = sphi 0, %s62
      %s77 = sphi 0, %s63
      %s81 = sphi 0, %s81
      %s83 = sphi 0, %s81
      %s84 = sphi 0, %s83
      %s98 = sphi 0, %s84
      %s106 = sphi 0, %s108
      %s109 = sphi 0, %s106
      %s110 = sphi 0, %s109
      %s126 = sphi 0, %s110
    $region4: #{upconv_block_subpixel.1} parent=1 // loop_header_branch
      %15 = sbr.rel (%p13) target = $region8
    $region5: #{upconv_block_subpixel.1} parent=1 // loop_body
      %s17 = ssub.s32 %s12, 1
      %s18 = ssub.s32 %s12, 2
      %s25 = sadd.s32 1, %s20
      %p26 = scmp.ge.s32.totalorder %s25, 1
      %s27 = scalar_select %p26, 0, %s25
      %s28 = sadd.s32 1, %s19
      %s29 = scalar_select %p26, %s28, %s19
      %p30 = scmp.ge.s32.totalorder %s29, 2
      %s31 = scalar_select %p30, 0, %s29
      %s32 = ssub.s32 %s19, %s31
      %s33 = ssub.s32 %s20, %s27
      %s34 = sor.u32 %s32, %s33
      %p35 = scmp.eq.s32.totalorder %s34, 0
      %s37 = sadd.s32 %s36, 1
      %s38 = scalar_select %p35, %s36, %s37
      %p41 = pneg %p35
      %p42 = scmp.eq.s32.totalorder %s12, 1
      %p43 = por %p41, %p42
      %p44 = scmp.ne.s32.totalorder %s36, %s39
      %p45 = scmp.eq.s32.totalorder %s12, 0
      %p46 = por %p44, %p45
      %p47 = scmp.ne.s32.totalorder %s36, %s39
      %p48 = scmp.eq.s32.totalorder %s17, 1
      %p49 = por %p47, %p48
      %p50 = scmp.ne.s32.totalorder %s39, %s40
      %p51 = scmp.eq.s32.totalorder %s17, 0
      %p52 = por %p50, %p51
      %p53 = scmp.ne.s32.totalorder %s39, %s40
      %p54 = scmp.eq.s32.totalorder %s18, 1
      %p55 = por %p53, %p54
      %p57 = scmp.ne.s32.totalorder %s40, %s56
      %p58 = scmp.eq.s32.totalorder %s18, 0
      %p59 = por %p57, %p58
      %s61 = sadd.s32 %s60, 1
      %p64 = scmp.eq.s32.totalorder %s12, 1
      %p65 = scmp.ne.s32.totalorder %s60, %s62
      %p66 = scmp.eq.s32.totalorder %s12, 0
      %p67 = por %p65, %p66
      %p68 = scmp.ne.s32.totalorder %s60, %s62
      %p69 = scmp.eq.s32.totalorder %s17, 1
      %p70 = por %p68, %p69
      %p71 = scmp.ne.s32.totalorder %s62, %s63
      %p72 = scmp.eq.s32.totalorder %s17, 0
      %p73 = por %p71, %p72
      %p74 = scmp.ne.s32.totalorder %s62, %s63
      %p75 = scmp.eq.s32.totalorder %s18, 1
      %p76 = por %p74, %p75
      %p78 = scmp.ne.s32.totalorder %s63, %s77
      %p79 = scmp.eq.s32.totalorder %s18, 0
      %p80 = por %p78, %p79
      %s82 = sadd.s32 %s81, 1
      %p85 = scmp.eq.s32.totalorder %s12, 1
      %p86 = scmp.ne.s32.totalorder %s81, %s83
      %p87 = scmp.eq.s32.totalorder %s12, 0
      %p88 = por %p86, %p87
      %p89 = scmp.ne.s32.totalorder %s81, %s83
      %p90 = scmp.eq.s32.totalorder %s17, 1
      %p91 = por %p89, %p90
      %p92 = scmp.ne.s32.totalorder %s83, %s84
      %p93 = scmp.eq.s32.totalorder %s17, 0
      %p94 = por %p92, %p93
      %p95 = scmp.ne.s32.totalorder %s83, %s84
      %p96 = scmp.eq.s32.totalorder %s18, 1
      %p97 = por %p95, %p96
      %p99 = scmp.ne.s32.totalorder %s84, %s98
      %p100 = scmp.eq.s32.totalorder %s18, 0
      %p101 = por %p99, %p100
      %s102 = ssub.s32 %s19, %s31
      %s103 = ssub.s32 %s20, %s27
      %s104 = sor.u32 %s102, %s103
      %p105 = scmp.eq.s32.totalorder %s104, 0
      %s107 = sadd.s32 %s106, 1
      %s108 = scalar_select %p105, %s106, %s107
      %p111 = pneg %p105
      %p112 = scmp.eq.s32.totalorder %s12, 1
      %p113 = por %p111, %p112
      %p114 = scmp.ne.s32.totalorder %s106, %s109
      %p115 = scmp.eq.s32.totalorder %s12, 0
      %p116 = por %p114, %p115
      %p117 = scmp.ne.s32.totalorder %s106, %s109
      %p118 = scmp.eq.s32.totalorder %s17, 1
      %p119 = por %p117, %p118
      %p120 = scmp.ne.s32.totalorder %s109, %s110
      %p121 = scmp.eq.s32.totalorder %s17, 0
      %p122 = por %p120, %p121
      %p123 = scmp.ne.s32.totalorder %s109, %s110
      %p124 = scmp.eq.s32.totalorder %s18, 1
      %p125 = por %p123, %p124
      %p127 = scmp.ne.s32.totalorder %s110, %s126
      %p128 = scmp.eq.s32.totalorder %s18, 0
      %p129 = por %p127, %p128
      %p130 = scmp.le.s32.totalorder 1, %s12
      %p131 = scmp.lt.s32.totalorder %s12, 3
      %p132 = pnand %p130, %p131
      %p133 = pneg %p132
      // Predicated region
      $region9: #{upconv_block_subpixel.1} parent=5 // pred_check
        _
      $region10: #{upconv_block_subpixel.1} parent=5 // pred_check_branch
        %135 = sbr.rel (%p132) target = $region12
      $region11: #{upconv_block_subpixel.1} parent=5 // pred_region
        %s136 = ssub.s32 %s12, 1
        // Predicated region
        $region13: #{upconv_block_subpixel.1} parent=11 // pred_check
          %p137 = pneg %p73
        $region14: #{upconv_block_subpixel.1} parent=11 // pred_check_branch
          %139 = sbr.rel (%p137) target = $region16
        $region15: #{upconv_block_subpixel.1} parent=11 // pred_region
          _
        $region16: #{upconv_block_subpixel.1} parent=11 // pred_fallthru
          _
        // Predicated region
        $region17: #{upconv_block_subpixel.1} parent=11 // pred_check
          %p140 = pneg %p94
        $region18: #{upconv_block_subpixel.1} parent=11 // pred_check_branch
          %142 = sbr.rel (%p140) target = $region20
        $region19: #{upconv_block_subpixel.1} parent=11 // pred_region
          _
        $region20: #{upconv_block_subpixel.1} parent=11 // pred_fallthru
          _
      $region12: #{upconv_block_subpixel.1} parent=5 // pred_fallthru
        _
      %p143 = scmp.lt.s32.totalorder %s12, 2
      // Predicated region
      $region21: #{upconv_block_subpixel.1} parent=5 // pred_check
        %p144 = pneg %p143
      $region22: #{upconv_block_subpixel.1} parent=5 // pred_check_branch
        %146 = sbr.rel (%p144) target = $region24
      $region23: #{upconv_block_subpixel.1} parent=5 // pred_region
        // Predicated region
        $region25: #{upconv_block_subpixel.1} parent=23 // pred_check
          %p147 = pneg %p46
        $region26: #{upconv_block_subpixel.1} parent=23 // pred_check_branch
          %149 = sbr.rel (%p147) target = $region28
        $region27: #{upconv_block_subpixel.1} parent=23 // pred_region
          %s150 = sand.u32 %s36, 1
          %s151 = scalar_lea.sflag [#allocation3], %s150
          %s152 = sand.u32 %s36, 1
          %s153 = smul.addr %s152, 256
          %s154 = scalar_lea.vmem [#allocation2], %s153
          %s155 = smul.u32 16, %s20
          %s157 = ssub.s32 4096, 4096
          %158 = vsyncadd %s151, %s157
          %s159 = smul.addr %s155, 2
          %s160 = smul.addr %s19, 32
          %s161 = sadd.s32 %s159, %s160
          %s162 = smul.addr %s161, 128
          %s163 = scalar_lea.hbm %s0, %s162
          %s164 = sshll.u32 %s154, 4
          %s165 = int_to_ptr.vmem [resolvable:$true] %s164
          %170 = dma.hbm_to_vmem [thread:$0]  %s163, 4096, %s165, %s151, 128, 128, 8
        $region28: #{upconv_block_subpixel.1} parent=23 // pred_fallthru
          _
      $region24: #{upconv_block_subpixel.1} parent=5 // pred_fallthru
        _
      %p171 = scmp.le.s32.totalorder 1, %s12
      %p172 = scmp.lt.s32.totalorder %s12, 3
      %p173 = pnand %p171, %p172
      %p174 = pneg %p173
      // Predicated region
      $region29: #{upconv_block_subpixel.1} parent=5 // pred_check
        _
      $region30: #{upconv_block_subpixel.1} parent=5 // pred_check_branch
        %176 = sbr.rel (%p173) target = $region32
      $region31: #{upconv_block_subpixel.1} parent=5 // pred_region
        %s177 = ssub.s32 %s12, 1
        %s178 = sand.u32 %s39, 1
        %s179 = scalar_lea.sflag [#allocation3], %s178
        %s180 = sand.u32 %s39, 1
        %s181 = smul.addr %s180, 256
        %s182 = scalar_lea.vmem [#allocation2], %s181
        // Predicated region
        $region33: #{upconv_block_subpixel.1} parent=31 // pred_check
          %p183 = pneg %p52
        $region34: #{upconv_block_subpixel.1} parent=31 // pred_check_branch
          %185 = sbr.rel (%p183) target = $region36
        $region35: #{upconv_block_subpixel.1} parent=31 // pred_region
          %186 = dma.done %s179, 4096
        $region36: #{upconv_block_subpixel.1} parent=31 // pred_fallthru
          _
        %s187 = sand.u32 %s39, 1
        %s188 = scalar_lea.sflag [#allocation3], %s187
        %s189 = sand.u32 %s39, 1
        %s190 = smul.addr %s189, 256
        %s191 = scalar_lea.vmem [#allocation2], %s190
        %p192 = pneg %p52
        %p193 = pneg %p49
        %p194 = pneg %p73
        %p195 = pneg %p70
        %p196 = pneg %p94
        %p197 = pneg %p91
        %p198 = pneg %p122
        %p199 = pneg %p119
        %s200 = smul.u32 16, %s22
        %p201 = scmp.lt.s32.totalorder %s21, 1
        %s202 = scalar_select %p201, %s21, 1
        %p203 = scmp.lt.s32.totalorder %s200, 15
        %s204 = scalar_select %p203, %s200, 15
        %s205 = smul.addr %s204, 4
        %s206 = smul.addr %s202, 64
        %s207 = sadd.s32 %s205, %s206
        %s208 = smul.addr %s207, 8
        %s209 = scalar_lea.vmem %s3, %s208
        %s210 = smul.u32 16, %s22
        %s211 = smul.u32 16, %s22
        %p212 = scmp.lt.s32.totalorder %s21, 1
        %s213 = scalar_select %p212, %s21, 1
        %p214 = scmp.lt.s32.totalorder %s211, 15
        %s215 = scalar_select %p214, %s211, 15
        %s216 = smul.addr %s215, 4
        %s217 = smul.addr %s213, 64
        %s218 = sadd.s32 %s216, %s217
        %s219 = smul.addr %s218, 8
        %s220 = scalar_lea.vmem %s3, %s219
        %s221 = smul.u32 16, %s22
        %v222 = vld [vmem:[%s182] sm:$0xff]
        %v223 = vld [vmem:[%s182 + $0x8] sm:$0xff]
        %v224 = vld [vmem:[%s182 + $0x10] sm:$0xff]
        %v225 = vld [vmem:[%s182 + $0x18] sm:$0xff]
        %v226 = vld [vmem:[%s182 + $0x20] sm:$0xff]
        %v227 = vld [vmem:[%s182 + $0x28] sm:$0xff]
        %v228 = vld [vmem:[%s182 + $0x30] sm:$0xff]
        %v229 = vld [vmem:[%s182 + $0x38] sm:$0xff]
        %v230 = vld [vmem:[%s182 + $0x40] sm:$0xff]
        %v231 = vld [vmem:[%s182 + $0x48] sm:$0xff]
        %v232 = vld [vmem:[%s182 + $0x50] sm:$0xff]
        %v233 = vld [vmem:[%s182 + $0x58] sm:$0xff]
        %v234 = vld [vmem:[%s182 + $0x60] sm:$0xff]
        %v235 = vld [vmem:[%s182 + $0x68] sm:$0xff]
        %v236 = vld [vmem:[%s182 + $0x70] sm:$0xff]
        %v237 = vld [vmem:[%s182 + $0x78] sm:$0xff]
        %v238 = vld [vmem:[%s182 + $0x80] sm:$0xff]
        %v239 = vld [vmem:[%s182 + $0x88] sm:$0xff]
        %v240 = vld [vmem:[%s182 + $0x90] sm:$0xff]
        %v241 = vld [vmem:[%s182 + $0x98] sm:$0xff]
        %v242 = vld [vmem:[%s182 + $0xa0] sm:$0xff]
        %v243 = vld [vmem:[%s182 + $0xa8] sm:$0xff]
        %v244 = vld [vmem:[%s182 + $0xb0] sm:$0xff]
        %v245 = vld [vmem:[%s182 + $0xb8] sm:$0xff]
        %v246 = vld [vmem:[%s182 + $0xc0] sm:$0xff]
        %v247 = vld [vmem:[%s182 + $0xc8] sm:$0xff]
        %v248 = vld [vmem:[%s182 + $0xd0] sm:$0xff]
        %v249 = vld [vmem:[%s182 + $0xd8] sm:$0xff]
        %v250 = vld [vmem:[%s182 + $0xe0] sm:$0xff]
        %v251 = vld [vmem:[%s182 + $0xe8] sm:$0xff]
        %v252 = vld [vmem:[%s182 + $0xf0] sm:$0xff]
        %v253 = vld [vmem:[%s182 + $0xf8] sm:$0xff]
        %v254 = vld [vmem:[%s1] sm:$0xff]
        %v255 = vld [vmem:[%s1 + $0x8] sm:$0xff]
        %v256 = vld [vmem:[%s1 + $0x10] sm:$0xff]
        %v257 = vld [vmem:[%s1 + $0x18] sm:$0xff]
        %v258 = vld [vmem:[%s2] sm:$0x1]
        %v260 = vlaneseq
        %v261 = vshrl.u32 %v260, 7
        %v262 = vsub.s32 0, %v261
        %v263 = vrot.slane %v258, %v262
        %vm265 = vcmask 261120
        %v267 = vsel %vm265, %v222, 0
        %v270 = vsel %vm265, %v223, 0
        %v273 = vsel %vm265, %v224, 0
        %v276 = vsel %vm265, %v225, 0
        %v279 = vsel %vm265, %v226, 0
        %v282 = vsel %vm265, %v227, 0
        %v285 = vsel %vm265, %v228, 0
        %v288 = vsel %vm265, %v229, 0
        %v291 = vsel %vm265, %v230, 0
        %v294 = vsel %vm265, %v231, 0
        %v297 = vsel %vm265, %v232, 0
        %v300 = vsel %vm265, %v233, 0
        %v303 = vsel %vm265, %v234, 0
        %v306 = vsel %vm265, %v235, 0
        %v309 = vsel %vm265, %v236, 0
        %v312 = vsel %vm265, %v237, 0
        %v315 = vsel %vm265, %v238, 0
        %v318 = vsel %vm265, %v239, 0
        %v321 = vsel %vm265, %v240, 0
        %v324 = vsel %vm265, %v241, 0
        %v327 = vsel %vm265, %v242, 0
        %v330 = vsel %vm265, %v243, 0
        %v333 = vsel %vm265, %v244, 0
        %v336 = vsel %vm265, %v245, 0
        %v339 = vsel %vm265, %v246, 0
        %v342 = vsel %vm265, %v247, 0
        %v345 = vsel %vm265, %v248, 0
        %v348 = vsel %vm265, %v249, 0
        %v351 = vsel %vm265, %v250, 0
        %v354 = vsel %vm265, %v251, 0
        %v357 = vsel %vm265, %v252, 0
        %v360 = vsel %vm265, %v253, 0
        %362 = vmatprep.subr.mxu0 0.0
        %363 = vmatpush1.msra.mxu0 0.0
        %364 = vmatprep.subr.mxu0 0.0
        %365 = vmatpush1.msra.mxu0 0.0
        %366 = vmatprep.subr.mxu0 0.0
        %367 = vmatpush1.msra.mxu0 0.0
        %368 = vmatprep.subr.mxu0 0.0
        %369 = vmatpush1.msra.mxu0 0.0
        %370 = vmatprep.subr.mxu0 0.0
        %371 = vmatpush1.msra.mxu0 0.0
        %372 = vmatprep.subr.mxu0 0.0
        %373 = vmatpush1.msra.mxu0 0.0
        %374 = vmatprep.subr.mxu0 0.0
        %375 = vmatpush1.msra.mxu0 0.0
        %376 = vmatprep.subr.mxu0 0.0
        %377 = vmatpush1.msra.mxu0 0.0
        %378 = vmatprep.subr.mxu0 0.0
        %379 = vmatpush1.msra.mxu0 0.0
        %380 = vmatprep.subr.mxu0 0.0
        %381 = vmatpush1.msra.mxu0 0.0
        %382 = vmatprep.subr.mxu0 0.0
        %383 = vmatpush1.msra.mxu0 0.0
        %384 = vmatprep.subr.mxu0 0.0
        %385 = vmatpush1.msra.mxu0 0.0
        %386 = vmatprep.subr.mxu0 0.0
        %387 = vmatpush1.msra.mxu0 %v257
        %388 = vmatprep.subr.mxu0 0.0
        %389 = vmatpush1.msra.mxu0 %v256
        %390 = vmatprep.subr.mxu0 0.0
        %391 = vmatpush1.msra.mxu0 %v255
        %392 = vmatprep.subr.mxu0 0.0
        %393 = vmatpush1.msra.mxu0 %v254
        %394 = vmatprep.subr.mxu0 0.0
        %395 = vmatpush2.msra.mxu0 0.0
        %396 = vmatprep.subr.mxu0 0.0
        %397 = vmatpush2.msra.mxu0 0.0
        %398 = vmatprep.subr.mxu0 0.0
        %399 = vmatpush2.msra.mxu0 0.0
        %400 = vmatprep.subr.mxu0 0.0
        %401 = vmatpush2.msra.mxu0 0.0
        %402 = vmatprep.subr.mxu0 0.0
        %403 = vmatpush2.msra.mxu0 0.0
        %404 = vmatprep.subr.mxu0 0.0
        %405 = vmatpush2.msra.mxu0 0.0
        %406 = vmatprep.subr.mxu0 0.0
        %407 = vmatpush2.msra.mxu0 0.0
        %408 = vmatprep.subr.mxu0 0.0
        %409 = vmatpush2.msra.mxu0 0.0
        %410 = vmatprep.subr.mxu0 0.0
        %411 = vmatpush2.msra.mxu0 0.0
        %412 = vmatprep.subr.mxu0 0.0
        %413 = vmatpush2.msra.mxu0 0.0
        %414 = vmatprep.subr.mxu0 0.0
        %415 = vmatpush2.msra.mxu0 0.0
        %416 = vmatprep.subr.mxu0 0.0
        %417 = vmatpush2.msra.mxu0 0.0
        %418 = vmatprep.subr.mxu0 0.0
        %419 = vmatpush2.msra.mxu0 0.0
        %420 = vmatprep.subr.mxu0 0.0
        %421 = vmatpush2.msra.mxu0 0.0
        %422 = vmatprep.subr.mxu0 0.0
        %423 = vmatpush2.msra.mxu0 0.0
        %424 = vmatprep.subr.mxu0 0.0
        %425 = vmatpush2.msra.mxu0 0.0
        %426 = vmatprep.mubr.f32.mxu0 0.0
        %427 = vmatmul.mubr.f32.gmra.mxu0 %v267
        %v428 = vpop.f32.mrf.mxu0
        %v429 = vadd.f32 %v263, %v428
        %v430 = vpop.f32.mrf.mxu0
        %431 = vmatprep.mubr.f32.mxu0 0.0
        %432 = vmatmul.mubr.f32.gmra.mxu0 %v270
        %v433 = vpop.f32.mrf.mxu0
        %v434 = vadd.f32 %v263, %v433
        %v435 = vpop.f32.mrf.mxu0
        %436 = vmatprep.mubr.f32.mxu0 0.0
        %437 = vmatmul.mubr.f32.gmra.mxu0 %v273
        %v438 = vpop.f32.mrf.mxu0
        %v439 = vadd.f32 %v263, %v438
        %v440 = vpop.f32.mrf.mxu0
        %441 = vmatprep.mubr.f32.mxu0 0.0
        %442 = vmatmul.mubr.f32.gmra.mxu0 %v276
        %v443 = vpop.f32.mrf.mxu0
        %v444 = vadd.f32 %v263, %v443
        %v445 = vpop.f32.mrf.mxu0
        %446 = vmatprep.mubr.f32.mxu0 0.0
        %447 = vmatmul.mubr.f32.gmra.mxu0 %v279
        %v448 = vpop.f32.mrf.mxu0
        %v449 = vadd.f32 %v263, %v448
        %v450 = vpop.f32.mrf.mxu0
        %451 = vmatprep.mubr.f32.mxu0 0.0
        %452 = vmatmul.mubr.f32.gmra.mxu0 %v282
        %v453 = vpop.f32.mrf.mxu0
        %v454 = vadd.f32 %v263, %v453
        %v455 = vpop.f32.mrf.mxu0
        %456 = vmatprep.mubr.f32.mxu0 0.0
        %457 = vmatmul.mubr.f32.gmra.mxu0 %v285
        %v458 = vpop.f32.mrf.mxu0
        %v459 = vadd.f32 %v263, %v458
        %v460 = vpop.f32.mrf.mxu0
        %461 = vmatprep.mubr.f32.mxu0 0.0
        %462 = vmatmul.mubr.f32.gmra.mxu0 %v288
        %v463 = vpop.f32.mrf.mxu0
        %v464 = vadd.f32 %v263, %v463
        %v465 = vpop.f32.mrf.mxu0
        %466 = vmatprep.mubr.f32.mxu0 0.0
        %467 = vmatmul.mubr.f32.gmra.mxu0 %v291
        %v468 = vpop.f32.mrf.mxu0
        %v469 = vadd.f32 %v263, %v468
        %v470 = vpop.f32.mrf.mxu0
        %471 = vmatprep.mubr.f32.mxu0 0.0
        %472 = vmatmul.mubr.f32.gmra.mxu0 %v294
        %v473 = vpop.f32.mrf.mxu0
        %v474 = vadd.f32 %v263, %v473
        %v475 = vpop.f32.mrf.mxu0
        %476 = vmatprep.mubr.f32.mxu0 0.0
        %477 = vmatmul.mubr.f32.gmra.mxu0 %v297
        %v478 = vpop.f32.mrf.mxu0
        %v479 = vadd.f32 %v263, %v478
        %v480 = vpop.f32.mrf.mxu0
        %481 = vmatprep.mubr.f32.mxu0 0.0
        %482 = vmatmul.mubr.f32.gmra.mxu0 %v300
        %v483 = vpop.f32.mrf.mxu0
        %v484 = vadd.f32 %v263, %v483
        %v485 = vpop.f32.mrf.mxu0
        %486 = vmatprep.mubr.f32.mxu0 0.0
        %487 = vmatmul.mubr.f32.gmra.mxu0 %v303
        %v488 = vpop.f32.mrf.mxu0
        %v489 = vadd.f32 %v263, %v488
        %v490 = vpop.f32.mrf.mxu0
        %491 = vmatprep.mubr.f32.mxu0 0.0
        %492 = vmatmul.mubr.f32.gmra.mxu0 %v306
        %v493 = vpop.f32.mrf.mxu0
        %v494 = vadd.f32 %v263, %v493
        %v495 = vpop.f32.mrf.mxu0
        %496 = vmatprep.mubr.f32.mxu0 0.0
        %497 = vmatmul.mubr.f32.gmra.mxu0 %v309
        %v498 = vpop.f32.mrf.mxu0
        %v499 = vadd.f32 %v263, %v498
        %v500 = vpop.f32.mrf.mxu0
        %501 = vmatprep.mubr.f32.mxu0 0.0
        %502 = vmatmul.mubr.f32.gmra.mxu0 %v312
        %v503 = vpop.f32.mrf.mxu0
        %v504 = vadd.f32 %v263, %v503
        %v505 = vpop.f32.mrf.mxu0
        %506 = vmatprep.mubr.f32.mxu0 0.0
        %507 = vmatmul.mubr.f32.gmra.mxu0 %v315
        %v508 = vpop.f32.mrf.mxu0
        %v509 = vadd.f32 %v263, %v508
        %v510 = vpop.f32.mrf.mxu0
        %511 = vmatprep.mubr.f32.mxu0 0.0
        %512 = vmatmul.mubr.f32.gmra.mxu0 %v318
        %v513 = vpop.f32.mrf.mxu0
        %v514 = vadd.f32 %v263, %v513
        %v515 = vpop.f32.mrf.mxu0
        %516 = vmatprep.mubr.f32.mxu0 0.0
        %517 = vmatmul.mubr.f32.gmra.mxu0 %v321
        %v518 = vpop.f32.mrf.mxu0
        %v519 = vadd.f32 %v263, %v518
        %v520 = vpop.f32.mrf.mxu0
        %521 = vmatprep.mubr.f32.mxu0 0.0
        %522 = vmatmul.mubr.f32.gmra.mxu0 %v324
        %v523 = vpop.f32.mrf.mxu0
        %v524 = vadd.f32 %v263, %v523
        %v525 = vpop.f32.mrf.mxu0
        %526 = vmatprep.mubr.f32.mxu0 0.0
        %527 = vmatmul.mubr.f32.gmra.mxu0 %v327
        %v528 = vpop.f32.mrf.mxu0
        %v529 = vadd.f32 %v263, %v528
        %v530 = vpop.f32.mrf.mxu0
        %531 = vmatprep.mubr.f32.mxu0 0.0
        %532 = vmatmul.mubr.f32.gmra.mxu0 %v330
        %v533 = vpop.f32.mrf.mxu0
        %v534 = vadd.f32 %v263, %v533
        %v535 = vpop.f32.mrf.mxu0
        %536 = vmatprep.mubr.f32.mxu0 0.0
        %537 = vmatmul.mubr.f32.gmra.mxu0 %v333
        %v538 = vpop.f32.mrf.mxu0
        %v539 = vadd.f32 %v263, %v538
        %v540 = vpop.f32.mrf.mxu0
        %541 = vmatprep.mubr.f32.mxu0 0.0
        %542 = vmatmul.mubr.f32.gmra.mxu0 %v336
        %v543 = vpop.f32.mrf.mxu0
        %v544 = vadd.f32 %v263, %v543
        %v545 = vpop.f32.mrf.mxu0
        %546 = vmatprep.mubr.f32.mxu0 0.0
        %547 = vmatmul.mubr.f32.gmra.mxu0 %v339
        %v548 = vpop.f32.mrf.mxu0
        %v549 = vadd.f32 %v263, %v548
        %v550 = vpop.f32.mrf.mxu0
        %551 = vmatprep.mubr.f32.mxu0 0.0
        %552 = vmatmul.mubr.f32.gmra.mxu0 %v342
        %v553 = vpop.f32.mrf.mxu0
        %v554 = vadd.f32 %v263, %v553
        %v555 = vpop.f32.mrf.mxu0
        %556 = vmatprep.mubr.f32.mxu0 0.0
        %557 = vmatmul.mubr.f32.gmra.mxu0 %v345
        %v558 = vpop.f32.mrf.mxu0
        %v559 = vadd.f32 %v263, %v558
        %v560 = vpop.f32.mrf.mxu0
        %561 = vmatprep.mubr.f32.mxu0 0.0
        %562 = vmatmul.mubr.f32.gmra.mxu0 %v348
        %v563 = vpop.f32.mrf.mxu0
        %v564 = vadd.f32 %v263, %v563
        %v565 = vpop.f32.mrf.mxu0
        %566 = vmatprep.mubr.f32.mxu0 0.0
        %567 = vmatmul.mubr.f32.gmra.mxu0 %v351
        %v568 = vpop.f32.mrf.mxu0
        %v569 = vadd.f32 %v263, %v568
        %v570 = vpop.f32.mrf.mxu0
        %571 = vmatprep.mubr.f32.mxu0 0.0
        %572 = vmatmul.mubr.f32.gmra.mxu0 %v354
        %v573 = vpop.f32.mrf.mxu0
        %v574 = vadd.f32 %v263, %v573
        %v575 = vpop.f32.mrf.mxu0
        %576 = vmatprep.mubr.f32.mxu0 0.0
        %577 = vmatmul.mubr.f32.gmra.mxu0 %v357
        %v578 = vpop.f32.mrf.mxu0
        %v579 = vadd.f32 %v263, %v578
        %v580 = vpop.f32.mrf.mxu0
        %581 = vmatprep.mubr.f32.mxu0 0.0
        %582 = vmatmul.mubr.f32.gmra.mxu0 %v360
        %v583 = vpop.f32.mrf.mxu0
        %v584 = vadd.f32 %v263, %v583
        %v585 = vpop.f32.mrf.mxu0
        %586 = vdwg.mxu0
        %v587 = vxor.u32 %v429, 2147483648
        %v588 = vxor.u32 %v434, 2147483648
        %v589 = vxor.u32 %v439, 2147483648
        %v590 = vxor.u32 %v444, 2147483648
        %v591 = vxor.u32 %v449, 2147483648
        %v592 = vxor.u32 %v454, 2147483648
        %v593 = vxor.u32 %v459, 2147483648
        %v594 = vxor.u32 %v464, 2147483648
        %v595 = vxor.u32 %v469, 2147483648
        %v596 = vxor.u32 %v474, 2147483648
        %v597 = vxor.u32 %v479, 2147483648
        %v598 = vxor.u32 %v484, 2147483648
        %v599 = vxor.u32 %v489, 2147483648
        %v600 = vxor.u32 %v494, 2147483648
        %v601 = vxor.u32 %v499, 2147483648
        %v602 = vxor.u32 %v504, 2147483648
        %v603 = vxor.u32 %v509, 2147483648
        %v604 = vxor.u32 %v514, 2147483648
        %v605 = vxor.u32 %v519, 2147483648
        %v606 = vxor.u32 %v524, 2147483648
        %v607 = vxor.u32 %v529, 2147483648
        %v608 = vxor.u32 %v534, 2147483648
        %v609 = vxor.u32 %v539, 2147483648
        %v610 = vxor.u32 %v544, 2147483648
        %v611 = vxor.u32 %v549, 2147483648
        %v612 = vxor.u32 %v554, 2147483648
        %v613 = vxor.u32 %v559, 2147483648
        %v614 = vxor.u32 %v564, 2147483648
        %v615 = vxor.u32 %v569, 2147483648
        %v616 = vxor.u32 %v574, 2147483648
        %v617 = vxor.u32 %v579, 2147483648
        %v618 = vxor.u32 %v584, 2147483648
        %v619 = vmul.f32 %v587, 1.442695
        %v620 = vpow.pop %v619
        %v621 = vmul.f32 %v588, 1.442695
        %v622 = vpow.pop %v621
        %v623 = vmul.f32 %v589, 1.442695
        %v624 = vpow.pop %v623
        %v625 = vmul.f32 %v590, 1.442695
        %v626 = vpow.pop %v625
        %v627 = vmul.f32 %v591, 1.442695
        %v628 = vpow.pop %v627
        %v629 = vmul.f32 %v592, 1.442695
        %v630 = vpow.pop %v629
        %v631 = vmul.f32 %v593, 1.442695
        %v632 = vpow.pop %v631
        %v633 = vmul.f32 %v594, 1.442695
        %v634 = vpow.pop %v633
        %v635 = vmul.f32 %v595, 1.442695
        %v636 = vpow.pop %v635
        %v637 = vmul.f32 %v596, 1.442695
        %v638 = vpow.pop %v637
        %v639 = vmul.f32 %v597, 1.442695
        %v640 = vpow.pop %v639
        %v641 = vmul.f32 %v598, 1.442695
        %v642 = vpow.pop %v641
        %v643 = vmul.f32 %v599, 1.442695
        %v644 = vpow.pop %v643
        %v645 = vmul.f32 %v600, 1.442695
        %v646 = vpow.pop %v645
        %v647 = vmul.f32 %v601, 1.442695
        %v648 = vpow.pop %v647
        %v649 = vmul.f32 %v602, 1.442695
        %v650 = vpow.pop %v649
        %v651 = vmul.f32 %v603, 1.442695
        %v652 = vpow.pop %v651
        %v653 = vmul.f32 %v604, 1.442695
        %v654 = vpow.pop %v653
        %v655 = vmul.f32 %v605, 1.442695
        %v656 = vpow.pop %v655
        %v657 = vmul.f32 %v606, 1.442695
        %v658 = vpow.pop %v657
        %v659 = vmul.f32 %v607, 1.442695
        %v660 = vpow.pop %v659
        %v661 = vmul.f32 %v608, 1.442695
        %v662 = vpow.pop %v661
        %v663 = vmul.f32 %v609, 1.442695
        %v664 = vpow.pop %v663
        %v665 = vmul.f32 %v610, 1.442695
        %v666 = vpow.pop %v665
        %v667 = vmul.f32 %v611, 1.442695
        %v668 = vpow.pop %v667
        %v669 = vmul.f32 %v612, 1.442695
        %v670 = vpow.pop %v669
        %v671 = vmul.f32 %v613, 1.442695
        %v672 = vpow.pop %v671
        %v673 = vmul.f32 %v614, 1.442695
        %v674 = vpow.pop %v673
        %v675 = vmul.f32 %v615, 1.442695
        %v676 = vpow.pop %v675
        %v677 = vmul.f32 %v616, 1.442695
        %v678 = vpow.pop %v677
        %v679 = vmul.f32 %v617, 1.442695
        %v680 = vpow.pop %v679
        %v681 = vmul.f32 %v618, 1.442695
        %v682 = vpow.pop %v681
        %v683 = vadd.f32 %v620, 1.0
        %v684 = vadd.f32 %v622, 1.0
        %v685 = vadd.f32 %v624, 1.0
        %v686 = vadd.f32 %v626, 1.0
        %v687 = vadd.f32 %v628, 1.0
        %v688 = vadd.f32 %v630, 1.0
        %v689 = vadd.f32 %v632, 1.0
        %v690 = vadd.f32 %v634, 1.0
        %v691 = vadd.f32 %v636, 1.0
        %v692 = vadd.f32 %v638, 1.0
        %v693 = vadd.f32 %v640, 1.0
        %v694 = vadd.f32 %v642, 1.0
        %v695 = vadd.f32 %v644, 1.0
        %v696 = vadd.f32 %v646, 1.0
        %v697 = vadd.f32 %v648, 1.0
        %v698 = vadd.f32 %v650, 1.0
        %v699 = vadd.f32 %v652, 1.0
        %v700 = vadd.f32 %v654, 1.0
        %v701 = vadd.f32 %v656, 1.0
        %v702 = vadd.f32 %v658, 1.0
        %v703 = vadd.f32 %v660, 1.0
        %v704 = vadd.f32 %v662, 1.0
        %v705 = vadd.f32 %v664, 1.0
        %v706 = vadd.f32 %v666, 1.0
        %v707 = vadd.f32 %v668, 1.0
        %v708 = vadd.f32 %v670, 1.0
        %v709 = vadd.f32 %v672, 1.0
        %v710 = vadd.f32 %v674, 1.0
        %v711 = vadd.f32 %v676, 1.0
        %v712 = vadd.f32 %v678, 1.0
        %v713 = vadd.f32 %v680, 1.0
        %v714 = vadd.f32 %v682, 1.0
        %v715 = vrcp.pop %v683
        %v716 = vmul.f32 1.0, %v715
        %v717 = vrcp.pop %v684
        %v718 = vmul.f32 1.0, %v717
        %v719 = vrcp.pop %v685
        %v720 = vmul.f32 1.0, %v719
        %v721 = vrcp.pop %v686
        %v722 = vmul.f32 1.0, %v721
        %v723 = vrcp.pop %v687
        %v724 = vmul.f32 1.0, %v723
        %v725 = vrcp.pop %v688
        %v726 = vmul.f32 1.0, %v725
        %v727 = vrcp.pop %v689
        %v728 = vmul.f32 1.0, %v727
        %v729 = vrcp.pop %v690
        %v730 = vmul.f32 1.0, %v729
        %v731 = vrcp.pop %v691
        %v732 = vmul.f32 1.0, %v731
        %v733 = vrcp.pop %v692
        %v734 = vmul.f32 1.0, %v733
        %v735 = vrcp.pop %v693
        %v736 = vmul.f32 1.0, %v735
        %v737 = vrcp.pop %v694
        %v738 = vmul.f32 1.0, %v737
        %v739 = vrcp.pop %v695
        %v740 = vmul.f32 1.0, %v739
        %v741 = vrcp.pop %v696
        %v742 = vmul.f32 1.0, %v741
        %v743 = vrcp.pop %v697
        %v744 = vmul.f32 1.0, %v743
        %v745 = vrcp.pop %v698
        %v746 = vmul.f32 1.0, %v745
        %v747 = vrcp.pop %v699
        %v748 = vmul.f32 1.0, %v747
        %v749 = vrcp.pop %v700
        %v750 = vmul.f32 1.0, %v749
        %v751 = vrcp.pop %v701
        %v752 = vmul.f32 1.0, %v751
        %v753 = vrcp.pop %v702
        %v754 = vmul.f32 1.0, %v753
        %v755 = vrcp.pop %v703
        %v756 = vmul.f32 1.0, %v755
        %v757 = vrcp.pop %v704
        %v758 = vmul.f32 1.0, %v757
        %v759 = vrcp.pop %v705
        %v760 = vmul.f32 1.0, %v759
        %v761 = vrcp.pop %v706
        %v762 = vmul.f32 1.0, %v761
        %v763 = vrcp.pop %v707
        %v764 = vmul.f32 1.0, %v763
        %v765 = vrcp.pop %v708
        %v766 = vmul.f32 1.0, %v765
        %v767 = vrcp.pop %v709
        %v768 = vmul.f32 1.0, %v767
        %v769 = vrcp.pop %v710
        %v770 = vmul.f32 1.0, %v769
        %v771 = vrcp.pop %v711
        %v772 = vmul.f32 1.0, %v771
        %v773 = vrcp.pop %v712
        %v774 = vmul.f32 1.0, %v773
        %v775 = vrcp.pop %v713
        %v776 = vmul.f32 1.0, %v775
        %v777 = vrcp.pop %v714
        %v778 = vmul.f32 1.0, %v777
        %v779 = vmul.f32 %v429, %v716
        %v780 = vmul.f32 %v434, %v718
        %v781 = vmul.f32 %v439, %v720
        %v782 = vmul.f32 %v444, %v722
        %v783 = vmul.f32 %v449, %v724
        %v784 = vmul.f32 %v454, %v726
        %v785 = vmul.f32 %v459, %v728
        %v786 = vmul.f32 %v464, %v730
        %v787 = vmul.f32 %v469, %v732
        %v788 = vmul.f32 %v474, %v734
        %v789 = vmul.f32 %v479, %v736
        %v790 = vmul.f32 %v484, %v738
        %v791 = vmul.f32 %v489, %v740
        %v792 = vmul.f32 %v494, %v742
        %v793 = vmul.f32 %v499, %v744
        %v794 = vmul.f32 %v504, %v746
        %v795 = vmul.f32 %v509, %v748
        %v796 = vmul.f32 %v514, %v750
        %v797 = vmul.f32 %v519, %v752
        %v798 = vmul.f32 %v524, %v754
        %v799 = vmul.f32 %v529, %v756
        %v800 = vmul.f32 %v534, %v758
        %v801 = vmul.f32 %v539, %v760
        %v802 = vmul.f32 %v544, %v762
        %v803 = vmul.f32 %v549, %v764
        %v804 = vmul.f32 %v554, %v766
        %v805 = vmul.f32 %v559, %v768
        %v806 = vmul.f32 %v564, %v770
        %v807 = vmul.f32 %v569, %v772
        %v808 = vmul.f32 %v574, %v774
        %v809 = vmul.f32 %v579, %v776
        %v810 = vmul.f32 %v584, %v778
        %vm811 = vcmask 64512
        %812 = vst.msk [vmem:[%s220] sm:$0xff] %vm811, %v779
        %813 = vst.msk [vmem:[%s220 + $0x8] sm:$0xff] %vm811, %v780
        %814 = vst.msk [vmem:[%s220 + $0x20] sm:$0xff] %vm811, %v781
        %815 = vst.msk [vmem:[%s220 + $0x28] sm:$0xff] %vm811, %v782
        %816 = vst.msk [vmem:[%s220 + $0x40] sm:$0xff] %vm811, %v783
        %817 = vst.msk [vmem:[%s220 + $0x48] sm:$0xff] %vm811, %v784
        %818 = vst.msk [vmem:[%s220 + $0x60] sm:$0xff] %vm811, %v785
        %819 = vst.msk [vmem:[%s220 + $0x68] sm:$0xff] %vm811, %v786
        %820 = vst.msk [vmem:[%s220 + $0x80] sm:$0xff] %vm811, %v787
        %821 = vst.msk [vmem:[%s220 + $0x88] sm:$0xff] %vm811, %v788
        %822 = vst.msk [vmem:[%s220 + $0xa0] sm:$0xff] %vm811, %v789
        %823 = vst.msk [vmem:[%s220 + $0xa8] sm:$0xff] %vm811, %v790
        %824 = vst.msk [vmem:[%s220 + $0xc0] sm:$0xff] %vm811, %v791
        %825 = vst.msk [vmem:[%s220 + $0xc8] sm:$0xff] %vm811, %v792
        %826 = vst.msk [vmem:[%s220 + $0xe0] sm:$0xff] %vm811, %v793
        %827 = vst.msk [vmem:[%s220 + $0xe8] sm:$0xff] %vm811, %v794
        %828 = vst.msk [vmem:[%s220 + $0x100] sm:$0xff] %vm811, %v795
        %829 = vst.msk [vmem:[%s220 + $0x108] sm:$0xff] %vm811, %v796
        %830 = vst.msk [vmem:[%s220 + $0x120] sm:$0xff] %vm811, %v797
        %831 = vst.msk [vmem:[%s220 + $0x128] sm:$0xff] %vm811, %v798
        %832 = vst.msk [vmem:[%s220 + $0x140] sm:$0xff] %vm811, %v799
        %833 = vst.msk [vmem:[%s220 + $0x148] sm:$0xff] %vm811, %v800
        %834 = vst.msk [vmem:[%s220 + $0x160] sm:$0xff] %vm811, %v801
        %835 = vst.msk [vmem:[%s220 + $0x168] sm:$0xff] %vm811, %v802
        %836 = vst.msk [vmem:[%s220 + $0x180] sm:$0xff] %vm811, %v803
        %837 = vst.msk [vmem:[%s220 + $0x188] sm:$0xff] %vm811, %v804
        %838 = vst.msk [vmem:[%s220 + $0x1a0] sm:$0xff] %vm811, %v805
        %839 = vst.msk [vmem:[%s220 + $0x1a8] sm:$0xff] %vm811, %v806
        %840 = vst.msk [vmem:[%s220 + $0x1c0] sm:$0xff] %vm811, %v807
        %841 = vst.msk [vmem:[%s220 + $0x1c8] sm:$0xff] %vm811, %v808
        %842 = vst.msk [vmem:[%s220 + $0x1e0] sm:$0xff] %vm811, %v809
        %843 = vst.msk [vmem:[%s220 + $0x1e8] sm:$0xff] %vm811, %v810
        %876 = vrot.lane.b32.xlu0 %v779, 120
        %v877 = vpop.permute.xlu0 %876
        %878 = vrot.lane.b32.xlu0 %v780, 120
        %v879 = vpop.permute.xlu0 %878
        %880 = vrot.lane.b32.xlu0 %v781, 120
        %v881 = vpop.permute.xlu0 %880
        %882 = vrot.lane.b32.xlu0 %v782, 120
        %v883 = vpop.permute.xlu0 %882
        %884 = vrot.lane.b32.xlu0 %v783, 120
        %v885 = vpop.permute.xlu0 %884
        %886 = vrot.lane.b32.xlu0 %v784, 120
        %v887 = vpop.permute.xlu0 %886
        %888 = vrot.lane.b32.xlu0 %v785, 120
        %v889 = vpop.permute.xlu0 %888
        %890 = vrot.lane.b32.xlu0 %v786, 120
        %v891 = vpop.permute.xlu0 %890
        %892 = vrot.lane.b32.xlu0 %v787, 120
        %v893 = vpop.permute.xlu0 %892
        %894 = vrot.lane.b32.xlu0 %v788, 120
        %v895 = vpop.permute.xlu0 %894
        %896 = vrot.lane.b32.xlu0 %v789, 120
        %v897 = vpop.permute.xlu0 %896
        %898 = vrot.lane.b32.xlu0 %v790, 120
        %v899 = vpop.permute.xlu0 %898
        %900 = vrot.lane.b32.xlu0 %v791, 120
        %v901 = vpop.permute.xlu0 %900
        %902 = vrot.lane.b32.xlu0 %v792, 120
        %v903 = vpop.permute.xlu0 %902
        %904 = vrot.lane.b32.xlu0 %v793, 120
        %v905 = vpop.permute.xlu0 %904
        %906 = vrot.lane.b32.xlu0 %v794, 120
        %v907 = vpop.permute.xlu0 %906
        %908 = vrot.lane.b32.xlu0 %v795, 120
        %v909 = vpop.permute.xlu0 %908
        %910 = vrot.lane.b32.xlu0 %v796, 120
        %v911 = vpop.permute.xlu0 %910
        %912 = vrot.lane.b32.xlu0 %v797, 120
        %v913 = vpop.permute.xlu0 %912
        %914 = vrot.lane.b32.xlu0 %v798, 120
        %v915 = vpop.permute.xlu0 %914
        %916 = vrot.lane.b32.xlu0 %v799, 120
        %v917 = vpop.permute.xlu0 %916
        %918 = vrot.lane.b32.xlu0 %v800, 120
        %v919 = vpop.permute.xlu0 %918
        %920 = vrot.lane.b32.xlu0 %v801, 120
        %v921 = vpop.permute.xlu0 %920
        %922 = vrot.lane.b32.xlu0 %v802, 120
        %v923 = vpop.permute.xlu0 %922
        %924 = vrot.lane.b32.xlu0 %v803, 120
        %v925 = vpop.permute.xlu0 %924
        %926 = vrot.lane.b32.xlu0 %v804, 120
        %v927 = vpop.permute.xlu0 %926
        %928 = vrot.lane.b32.xlu0 %v805, 120
        %v929 = vpop.permute.xlu0 %928
        %930 = vrot.lane.b32.xlu0 %v806, 120
        %v931 = vpop.permute.xlu0 %930
        %932 = vrot.lane.b32.xlu0 %v807, 120
        %v933 = vpop.permute.xlu0 %932
        %934 = vrot.lane.b32.xlu0 %v808, 120
        %v935 = vpop.permute.xlu0 %934
        %936 = vrot.lane.b32.xlu0 %v809, 120
        %v937 = vpop.permute.xlu0 %936
        %938 = vrot.lane.b32.xlu0 %v810, 120
        %v939 = vpop.permute.xlu0 %938
        %s972 = scalar_lea.vmem %s220, 16
        %973 = vst.msk [vmem:[%s972] sm:$0xff] %vm811, %v877
        %974 = vst.msk [vmem:[%s972 + $0x8] sm:$0xff] %vm811, %v879
        %975 = vst.msk [vmem:[%s972 + $0x20] sm:$0xff] %vm811, %v881
        %976 = vst.msk [vmem:[%s972 + $0x28] sm:$0xff] %vm811, %v883
        %977 = vst.msk [vmem:[%s972 + $0x40] sm:$0xff] %vm811, %v885
        %978 = vst.msk [vmem:[%s972 + $0x48] sm:$0xff] %vm811, %v887
        %979 = vst.msk [vmem:[%s972 + $0x60] sm:$0xff] %vm811, %v889
        %980 = vst.msk [vmem:[%s972 + $0x68] sm:$0xff] %vm811, %v891
        %981 = vst.msk [vmem:[%s972 + $0x80] sm:$0xff] %vm811, %v893
        %982 = vst.msk [vmem:[%s972 + $0x88] sm:$0xff] %vm811, %v895
        %983 = vst.msk [vmem:[%s972 + $0xa0] sm:$0xff] %vm811, %v897
        %984 = vst.msk [vmem:[%s972 + $0xa8] sm:$0xff] %vm811, %v899
        %985 = vst.msk [vmem:[%s972 + $0xc0] sm:$0xff] %vm811, %v901
        %986 = vst.msk [vmem:[%s972 + $0xc8] sm:$0xff] %vm811, %v903
        %987 = vst.msk [vmem:[%s972 + $0xe0] sm:$0xff] %vm811, %v905
        %988 = vst.msk [vmem:[%s972 + $0xe8] sm:$0xff] %vm811, %v907
        %989 = vst.msk [vmem:[%s972 + $0x100] sm:$0xff] %vm811, %v909
        %990 = vst.msk [vmem:[%s972 + $0x108] sm:$0xff] %vm811, %v911
        %991 = vst.msk [vmem:[%s972 + $0x120] sm:$0xff] %vm811, %v913
        %992 = vst.msk [vmem:[%s972 + $0x128] sm:$0xff] %vm811, %v915
        %993 = vst.msk [vmem:[%s972 + $0x140] sm:$0xff] %vm811, %v917
        %994 = vst.msk [vmem:[%s972 + $0x148] sm:$0xff] %vm811, %v919
        %995 = vst.msk [vmem:[%s972 + $0x160] sm:$0xff] %vm811, %v921
        %996 = vst.msk [vmem:[%s972 + $0x168] sm:$0xff] %vm811, %v923
        %997 = vst.msk [vmem:[%s972 + $0x180] sm:$0xff] %vm811, %v925
        %998 = vst.msk [vmem:[%s972 + $0x188] sm:$0xff] %vm811, %v927
        %999 = vst.msk [vmem:[%s972 + $0x1a0] sm:$0xff] %vm811, %v929
        %1000 = vst.msk [vmem:[%s972 + $0x1a8] sm:$0xff] %vm811, %v931
        %1001 = vst.msk [vmem:[%s972 + $0x1c0] sm:$0xff] %vm811, %v933
        %1002 = vst.msk [vmem:[%s972 + $0x1c8] sm:$0xff] %vm811, %v935
        %1003 = vst.msk [vmem:[%s972 + $0x1e0] sm:$0xff] %vm811, %v937
        %1004 = vst.msk [vmem:[%s972 + $0x1e8] sm:$0xff] %vm811, %v939
        %s1005 = smul.u32 16, %s22
        %p1006 = scmp.lt.s32.totalorder %s21, 1
        %s1007 = scalar_select %p1006, %s21, 1
        %p1008 = scmp.lt.s32.totalorder %s1005, 15
        %s1009 = scalar_select %p1008, %s1005, 15
        %s1010 = smul.addr %s1009, 4
        %s1011 = smul.addr %s1007, 64
        %s1012 = sadd.s32 %s1010, %s1011
        %s1013 = smul.addr %s1012, 8
        %s1014 = scalar_lea.vmem %s3, %s1013
        // Predicated region
        $region37: #{upconv_block_subpixel.1} parent=31 // pred_check
          %p1015 = pneg %p119
        $region38: #{upconv_block_subpixel.1} parent=31 // pred_check_branch
          %1017 = sbr.rel (%p1015) target = $region40
        $region39: #{upconv_block_subpixel.1} parent=31 // pred_region
          %s1018 = smul.u32 16, %s22
        $region40: #{upconv_block_subpixel.1} parent=31 // pred_fallthru
          _
      $region32: #{upconv_block_subpixel.1} parent=5 // pred_fallthru
        _
      %p1019 = scmp.le.s32.totalorder 2, %s12
      // Predicated region
      $region41: #{upconv_block_subpixel.1} parent=5 // pred_check
        %p1020 = pneg %p1019
      $region42: #{upconv_block_subpixel.1} parent=5 // pred_check_branch
        %1022 = sbr.rel (%p1020) target = $region44
      $region43: #{upconv_block_subpixel.1} parent=5 // pred_region
        %s1023 = ssub.s32 %s12, 2
        // Predicated region
        $region45: #{upconv_block_subpixel.1} parent=43 // pred_check
          %p1024 = pneg %p125
        $region46: #{upconv_block_subpixel.1} parent=43 // pred_check_branch
          %1026 = sbr.rel (%p1024) target = $region48
        $region47: #{upconv_block_subpixel.1} parent=43 // pred_region
          %s1027 = smul.u32 16, %s24
          %p1028 = scmp.lt.s32.totalorder %s23, 1
          %s1029 = scalar_select %p1028, %s23, 1
          %p1030 = scmp.lt.s32.totalorder %s1027, 15
          %s1031 = scalar_select %p1030, %s1027, 15
          %s1032 = smul.addr %s1031, 4
          %s1033 = smul.addr %s1029, 64
          %s1034 = sadd.s32 %s1032, %s1033
          %s1035 = smul.addr %s1034, 8
          %s1036 = scalar_lea.vmem %s3, %s1035
        $region48: #{upconv_block_subpixel.1} parent=43 // pred_fallthru
          _
      $region44: #{upconv_block_subpixel.1} parent=5 // pred_fallthru
        _
    $region6: #{upconv_block_subpixel.1} parent=1 // loop_footer
      %s16 = sadd.s32 1, %s12
    $region7: #{upconv_block_subpixel.1} parent=1 // loop_footer_branch
      %11 = sbr.rel target = $region3
    $region8: #{upconv_block_subpixel.1} parent=1 // loop_exit
      _
    %1037 = vsyncpa [#allocation3], 1
    %s1038 = scalar_lea.sflag [#allocation3], 1
    %1039 = vsyncpa %s1038, 1

</llo_original>
